<compile_context>
chip_gen: v5e
topology: v5e:2x2
jax: 0.10.0
libtpu: 0.0.40
codegen_flags: <defaults>
</compile_context>

<pallas_src>
import functools

import jax
import jax.numpy as jnp
from jax.experimental import pallas as pl
from jax.experimental.pallas import tpu as pltpu


def _reorg_kernel(x_ref, o_ref, *, s, C):
    # x_ref: (1, TH, s, _W, s*C)   packed input rows feeding TH output rows
    # o_ref: (1, TH, _W, s*s*C)    TH output rows (NHWC channel-packed)
    #
    # Packed input row (h, s1) already has (s2, c) contiguous in its last dim,
    # which is exactly output channel range [s1*s*C, (s1+1)*s*C).  One wide copy
    # per s1 covers all TH rows at once.
    for s1 in range(s):
        o_ref[0, :, :, s1 * s * C:(s1 + 1) * s * C] = x_ref[0, :, s1, :, :]


def _pick_row_tile(_H, B, row_bytes, *, budget_bytes=4 * 1024 * 1024,
                   min_grid_steps=8):
    """Largest divisor TH of _H such that one block stays under `budget_bytes`
    (in+out, each double-buffered => ~4x that in VMEM) while keeping at least
    `min_grid_steps` grid steps for megacore sharding when possible."""
    best = 1
    for th in range(1, _H + 1):
        if _H % th:
            continue
        if th * row_bytes > budget_bytes:
            break
        if th > 1 and B * (_H // th) < min_grid_steps:
            break
        best = th
    return best


def reorg_pallas(x, stride):
    """x: (B, C, H, W) NCHW -> (B, stride*stride*C, H//stride, W//stride)."""
    B, C, H, W = x.shape
    s = int(stride)
    assert H % s == 0 and W % s == 0, (
        f"H ({H}) and W ({W}) must be divisible by stride ({s})")
    _H, _W = H // s, W // s

    # TODO(synk): these two transposes are each a full extra HBM pass; in a real
    # model keep activations NHWC end-to-end (or fuse the transpose into the
    # neighbouring op) so only the kernel's single read+write pass remains.
    x_nhwc = jnp.transpose(x, (0, 2, 3, 1))          # (B, H, W, C)
    x_pack = x_nhwc.reshape(B, _H, s, _W, s * C)     # free row-major reshape

    itemsize = jnp.dtype(x.dtype).itemsize
    row_bytes = s * s * C * _W * itemsize            # bytes per output row (== input side)
    TH = _pick_row_tile(_H, B, row_bytes)

    kernel = functools.partial(_reorg_kernel, s=s, C=C)

    y_nhwc = pl.pallas_call(
        kernel,
        out_shape=jax.ShapeDtypeStruct((B, _H, _W, s * s * C), x.dtype),
        grid=(B, _H // TH),
        in_specs=[
            pl.BlockSpec((1, TH, s, _W, s * C), lambda b, h: (b, h, 0, 0, 0)),
        ],
        out_specs=pl.BlockSpec((1, TH, _W, s * s * C), lambda b, h: (b, h, 0, 0)),
        compiler_params=pltpu.CompilerParams(
            dimension_semantics=("parallel", "parallel"),
            vmem_limit_bytes=64 * 1024 * 1024,
        ),
    )(x_pack)

    return jnp.transpose(y_nhwc, (0, 3, 1, 2))       # (B, s*s*C, _H, _W)


def reorg_reference(x, stride):
    """Pure-JAX mirror of the PyTorch forward (for verification)."""
    B, C, H, W = x.shape
    _H, _W = H // stride, W // stride
    x = x.reshape(B, C, _H, stride, _W, stride).transpose(0, 1, 2, 4, 3, 5)
    x = x.reshape(B, C, _H * _W, stride * stride).transpose(0, 1, 3, 2)
    x = x.reshape(B, C, stride * stride, _H, _W).transpose(0, 2, 1, 3, 4)
    return x.reshape(B, -1, _H, _W)


if __name__ == "__main__":
    stride = 2
    # C=64, s=2 matches the YOLOv2 reorg and gives lane-dense stores
    # (s*C = 128, s*s*C = 256), while staying small.
    B, C, H, W = 2, 64, 16, 16
    key = jax.random.PRNGKey(0)
    x = jax.random.normal(key, (B, C, H, W), dtype=jnp.float32)

    y = reorg_pallas(x, stride)
    y = jax.block_until_ready(y)

    y_ref = reorg_reference(x, stride)
    assert y.shape == (B, stride * stride * C, H // stride, W // stride), y.shape
    assert jnp.allclose(y, y_ref), "Pallas reorg output mismatch vs reference"

    print("KERNEL_OK")
</pallas_src>

<mosaic_0001>
module attributes {stable_mosaic.version = 11 : i64} {
  func.func @_reorg_kernel(%arg0: i32, %arg1: i32, %arg2: memref<1x2x2x8x128xf32, #tpu.memory_space<vmem>>, %arg3: memref<1x2x8x256xf32, #tpu.memory_space<vmem>>) attributes {dimension_semantics = [#tpu.dimension_semantics<parallel>, #tpu.dimension_semantics<parallel>], iteration_bounds = array<i64: 2, 4>, scalar_prefetch = 0 : i64, scratch_operands = 0 : i64, tpu.core_type = #tpu.core_type<tc>, window_params = [{transform_indices = @transform_0, window_bounds = array<i64: 1, 2, 2, 8, 128>}, {transform_indices = @transform_1, window_bounds = array<i64: 1, 2, 8, 256>}]} {
    %c0 = arith.constant 0 : index
    %c0_0 = arith.constant 0 : index
    %c0_1 = arith.constant 0 : index
    %c0_2 = arith.constant 0 : index
    %c0_3 = arith.constant 0 : index
    %0 = vector.load %arg2[%c0, %c0_0, %c0_1, %c0_2, %c0_3] : memref<1x2x2x8x128xf32, #tpu.memory_space<vmem>>, vector<1x2x1x8x128xf32>
    %1 = vector.shape_cast %0 : vector<1x2x1x8x128xf32> to vector<2x8x128xf32>
    %c0_4 = arith.constant 0 : index
    %c0_5 = arith.constant 0 : index
    %c0_6 = arith.constant 0 : index
    %c0_7 = arith.constant 0 : index
    %2 = vector.load %arg3[%c0_4, %c0_5, %c0_6, %c0_7] : memref<1x2x8x256xf32, #tpu.memory_space<vmem>>, vector<1x2x8x128xf32>
    %3 = vector.shape_cast %2 : vector<1x2x8x128xf32> to vector<2x8x128xf32>
    %4 = vector.shape_cast %1 : vector<2x8x128xf32> to vector<1x2x8x128xf32>
    tpu.vector_store %arg3[%c0_4, %c0_5, %c0_6, %c0_7], %4 {strides = array<i32>} : memref<1x2x8x256xf32, #tpu.memory_space<vmem>>, vector<1x2x8x128xf32>,
    %c0_8 = arith.constant 0 : index
    %c0_9 = arith.constant 0 : index
    %c1 = arith.constant 1 : index
    %c0_10 = arith.constant 0 : index
    %c0_11 = arith.constant 0 : index
    %5 = vector.load %arg2[%c0_8, %c0_9, %c1, %c0_10, %c0_11] : memref<1x2x2x8x128xf32, #tpu.memory_space<vmem>>, vector<1x2x1x8x128xf32>
    %6 = vector.shape_cast %5 : vector<1x2x1x8x128xf32> to vector<2x8x128xf32>
    %c0_12 = arith.constant 0 : index
    %c0_13 = arith.constant 0 : index
    %c0_14 = arith.constant 0 : index
    %c128 = arith.constant 128 : index
    %7 = vector.load %arg3[%c0_12, %c0_13, %c0_14, %c128] : memref<1x2x8x256xf32, #tpu.memory_space<vmem>>, vector<1x2x8x128xf32>
    %8 = vector.shape_cast %7 : vector<1x2x8x128xf32> to vector<2x8x128xf32>
    %9 = vector.shape_cast %6 : vector<2x8x128xf32> to vector<1x2x8x128xf32>
    tpu.vector_store %arg3[%c0_12, %c0_13, %c0_14, %c128], %9 {strides = array<i32>} : memref<1x2x8x256xf32, #tpu.memory_space<vmem>>, vector<1x2x8x128xf32>,
    return
  }
  func.func @transform_0(%arg0: i32, %arg1: i32) -> (i32, i32, i32, i32, i32) {
    %c0_i32 = arith.constant 0 : i32
    %c0_i32_0 = arith.constant 0 : i32
    %c0_i32_1 = arith.constant 0 : i32
    %c0_i32_2 = arith.constant 0 : i32
    return %arg0, %arg1, %c0_i32, %c0_i32_0, %c0_i32_1 : i32, i32, i32, i32, i32
  }
  func.func @transform_1(%arg0: i32, %arg1: i32) -> (i32, i32, i32, i32) {
    %c0_i32 = arith.constant 0 : i32
    %c0_i32_0 = arith.constant 0 : i32
    %c0_i32_1 = arith.constant 0 : i32
    return %arg0, %arg1, %c0_i32, %c0_i32_0 : i32, i32, i32, i32
  }
}

</mosaic_0001>

<llo_original>
// kernel: tpu_custom_call.1
$region0: #{tpu_custom_call.1}
  #allocation0 [shape = 'u32[]', space=smem, size = 0x4, offset = 0x4, fixed_abs, tag = 'smem constant byte address 0x4 - core index']
  #allocation1 [shape = 'u32[72,128]{1,0:T(1,128)}', space=vmem, size = 0x9000, scoped, tag = 'internal scratch']
  %s0 = inlined_call_operand.hbm [shape: f32[2,8,2,8,128], index: 0, kind: input, shape index: {}]
  %s1 = inlined_call_operand.hbm [shape: f32[2,8,8,256], index: 1, kind: output, shape index: {}]
  %s2 = sld [smem:[#allocation0]]
  $region41: #{tpu_custom_call.1} parent=0
    _
  %s4 = ssub.s32 1, %s2
  %s5 = scalar_select 0, %s4, %s2
  $region1: #{tpu_custom_call.1} parent=0
    #allocation2 [shape = 'u8[32768]{0}', space=vmem, size = 0x8000, scoped, tag = 'input window, operand 0']
    #allocation3 [shape = 's32[2]{0}', space=sflag, size = 0x8, scoped, tag = 'scoped memory for tpu_custom_call.1']
    #allocation4 [shape = 's32[2]{0}', space=sflag, size = 0x8, scoped, tag = 'scoped memory for tpu_custom_call.1']
    #allocation5 [shape = 'u8[32768]{0}', space=vmem, size = 0x8000, scoped, tag = 'output window, operand 0']
    %6 = vsyncpa [#allocation3], 0
    %s7 = scalar_lea.sflag [#allocation3], 1
    %8 = vsyncpa %s7, 0
    %9 = vsyncpa [#allocation4], 0
    %s10 = scalar_lea.sflag [#allocation4], 1
    %11 = vsyncpa %s10, 0
    loop: start=0, step=1, limit=10
    $region2: #{tpu_custom_call.1} parent=1 // loop_pre_header
      _
    $region3: #{tpu_custom_call.1} parent=1 // loop_header
      %s13 = sphi 0, %s17
      %p14 = scmp.ge.s32.totalorder %s13, 10
      %s20 = sphi 0, %s32
      %s21 = sphi 0, %s28
      %s22 = sphi 0, %s20
      %s23 = sphi 0, %s21
      %s24 = sphi 0, %s22
      %s25 = sphi 0, %s23
      %s37 = sphi 0, %s39
      %s40 = sphi 0, %s37
      %s41 = sphi 0, %s40
      %s57 = sphi 0, %s41
      %s65 = sphi 0, %s67
      %s68 = sphi 0, %s65
      %s69 = sphi 0, %s68
      %s85 = sphi 0, %s69
    $region4: #{tpu_custom_call.1} parent=1 // loop_header_branch
      %16 = sbr.rel (%p14) target = $region8
    $region5: #{tpu_custom_call.1} parent=1 // loop_body
      %s18 = ssub.s32 %s13, 1
      %s19 = ssub.s32 %s13, 2
      %s26 = sadd.s32 1, %s21
      %p27 = scmp.ge.s32.totalorder %s26, 4
      %s28 = scalar_select %p27, 0, %s26
      %s29 = sadd.s32 1, %s20
      %s30 = scalar_select %p27, %s29, %s20
      %p31 = scmp.ge.s32.totalorder %s30, 2
      %s32 = scalar_select %p31, 0, %s30
      %s33 = ssub.s32 %s20, %s32
      %s34 = ssub.s32 %s21, %s28
      %s35 = sor.u32 %s33, %s34
      %p36 = scmp.eq.s32.totalorder %s35, 0
      %s38 = sadd.s32 %s37, 1
      %s39 = scalar_select %p36, %s37, %s38
      %p42 = pneg %p36
      %p43 = scmp.eq.s32.totalorder %s13, 7
      %p44 = por %p42, %p43
      %p45 = scmp.ne.s32.totalorder %s37, %s40
      %p46 = scmp.eq.s32.totalorder %s13, 0
      %p47 = por %p45, %p46
      %p48 = scmp.ne.s32.totalorder %s37, %s40
      %p49 = scmp.eq.s32.totalorder %s18, 7
      %p50 = por %p48, %p49
      %p51 = scmp.ne.s32.totalorder %s40, %s41
      %p52 = scmp.eq.s32.totalorder %s18, 0
      %p53 = por %p51, %p52
      %p54 = scmp.ne.s32.totalorder %s40, %s41
      %p55 = scmp.eq.s32.totalorder %s19, 7
      %p56 = por %p54, %p55
      %p58 = scmp.ne.s32.totalorder %s41, %s57
      %p59 = scmp.eq.s32.totalorder %s19, 0
      %p60 = por %p58, %p59
      %s61 = ssub.s32 %s20, %s32
      %s62 = ssub.s32 %s21, %s28
      %s63 = sor.u32 %s61, %s62
      %p64 = scmp.eq.s32.totalorder %s63, 0
      %s66 = sadd.s32 %s65, 1
      %s67 = scalar_select %p64, %s65, %s66
      %p70 = pneg %p64
      %p71 = scmp.eq.s32.totalorder %s13, 7
      %p72 = por %p70, %p71
      %p73 = scmp.ne.s32.totalorder %s65, %s68
      %p74 = scmp.eq.s32.totalorder %s13, 0
      %p75 = por %p73, %p74
      %p76 = scmp.ne.s32.totalorder %s65, %s68
      %p77 = scmp.eq.s32.totalorder %s18, 7
      %p78 = por %p76, %p77
      %p79 = scmp.ne.s32.totalorder %s68, %s69
      %p80 = scmp.eq.s32.totalorder %s18, 0
      %p81 = por %p79, %p80
      %p82 = scmp.ne.s32.totalorder %s68, %s69
      %p83 = scmp.eq.s32.totalorder %s19, 7
      %p84 = por %p82, %p83
      %p86 = scmp.ne.s32.totalorder %s69, %s85
      %p87 = scmp.eq.s32.totalorder %s19, 0
      %p88 = por %p86, %p87
      %p89 = scmp.le.s32.totalorder 1, %s13
      %p90 = scmp.lt.s32.totalorder %s13, 9
      %p91 = pnand %p89, %p90
      %p92 = pneg %p91
      // Predicated region
      $region9: #{tpu_custom_call.1} parent=5 // pred_check
        _
      $region10: #{tpu_custom_call.1} parent=5 // pred_check_branch
        %94 = sbr.rel (%p91) target = $region12
      $region11: #{tpu_custom_call.1} parent=5 // pred_region
        %s95 = ssub.s32 %s13, 1
      $region12: #{tpu_custom_call.1} parent=5 // pred_fallthru
        _
      %p96 = scmp.lt.s32.totalorder %s13, 8
      // Predicated region
      $region13: #{tpu_custom_call.1} parent=5 // pred_check
        %p97 = pneg %p96
      $region14: #{tpu_custom_call.1} parent=5 // pred_check_branch
        %99 = sbr.rel (%p97) target = $region16
      $region15: #{tpu_custom_call.1} parent=5 // pred_region
        // Predicated region
        $region17: #{tpu_custom_call.1} parent=15 // pred_check
          %p100 = pneg %p47
        $region18: #{tpu_custom_call.1} parent=15 // pred_check_branch
          %102 = sbr.rel (%p100) target = $region20
        $region19: #{tpu_custom_call.1} parent=15 // pred_region
          %s103 = sand.u32 %s37, 1
          %s104 = scalar_lea.sflag [#allocation3], %s103
          %s105 = sand.u32 %s37, 1
          %s106 = smul.addr %s105, 32
          %s107 = scalar_lea.vmem [#allocation2], %s106
          %s108 = smul.u32 2, %s21
          %110 = vsyncadd %s104, 0
          %s111 = smul.addr %s108, 2
          %s112 = smul.addr %s20, 16
          %s113 = sadd.s32 %s111, %s112
          %s114 = smul.addr %s113, 8
          %s115 = scalar_lea.hbm %s0, %s114
          %s116 = sshll.u32 %s115, 4
          %s117 = int_to_ptr.hbm [resolvable:$true] %s116
          %s118 = sshll.u32 %s107, 4
          %s119 = int_to_ptr.vmem [resolvable:$true] %s118
          %124 = dma.hbm_to_vmem [thread:$0]  %s117, 512, %s119, %s104, 128, 128, 8
        $region20: #{tpu_custom_call.1} parent=15 // pred_fallthru
          _
      $region16: #{tpu_custom_call.1} parent=5 // pred_fallthru
        _
      %p125 = scmp.le.s32.totalorder 1, %s13
      %p126 = scmp.lt.s32.totalorder %s13, 9
      %p127 = pnand %p125, %p126
      %p128 = pneg %p127
      // Predicated region
      $region21: #{tpu_custom_call.1} parent=5 // pred_check
        _
      $region22: #{tpu_custom_call.1} parent=5 // pred_check_branch
        %130 = sbr.rel (%p127) target = $region24
      $region23: #{tpu_custom_call.1} parent=5 // pred_region
        %s131 = ssub.s32 %s13, 1
        %s132 = sand.u32 %s40, 1
        %s133 = scalar_lea.sflag [#allocation3], %s132
        %s134 = sand.u32 %s40, 1
        %s135 = smul.addr %s134, 32
        %s136 = scalar_lea.vmem [#allocation2], %s135
        // Predicated region
        $region25: #{tpu_custom_call.1} parent=23 // pred_check
          %p137 = pneg %p53
        $region26: #{tpu_custom_call.1} parent=23 // pred_check_branch
          %139 = sbr.rel (%p137) target = $region28
        $region27: #{tpu_custom_call.1} parent=23 // pred_region
          %141 = dma.done %s133, 512
        $region28: #{tpu_custom_call.1} parent=23 // pred_fallthru
          _
        %s142 = sand.u32 %s40, 1
        %s143 = scalar_lea.sflag [#allocation3], %s142
        %s144 = sand.u32 %s40, 1
        %s145 = smul.addr %s144, 32
        %s146 = scalar_lea.vmem [#allocation2], %s145
        %p147 = pneg %p53
        %p148 = pneg %p50
        %p149 = pneg %p81
        %p150 = pneg %p78
        %s151 = sand.u32 %s68, 1
        %s152 = scalar_lea.sflag [#allocation4], %s151
        %s153 = sand.u32 %s68, 1
        %s154 = smul.addr %s153, 32
        %s155 = scalar_lea.vmem [#allocation5], %s154
        %s156 = smul.u32 2, %s23
        %s157 = smul.u32 2, %s23
        %v158 = vld [vmem:[%s136] sm:$0xff]
        %v159 = vld [vmem:[%s136 + $0x10] sm:$0xff]
        %160 = vst [vmem:[%s155] sm:$0xff] %v158
        %161 = vst [vmem:[%s155 + $0x10] sm:$0xff] %v159
        %s162 = scalar_lea.vmem %s136, 8 [#allocation2]
        %v163 = vld [vmem:[%s162] sm:$0xff]
        %v164 = vld [vmem:[%s162 + $0x10] sm:$0xff]
        %165 = vst [vmem:[%s155 + $0x8] sm:$0xff] %v163
        %166 = vst [vmem:[%s155 + $0x18] sm:$0xff] %v164
        %s167 = sand.u32 %s68, 1
        %s168 = scalar_lea.sflag [#allocation4], %s167
        %s169 = sand.u32 %s68, 1
        %s170 = smul.addr %s169, 32
        %s171 = scalar_lea.vmem [#allocation5], %s170
        // Predicated region
        $region29: #{tpu_custom_call.1} parent=23 // pred_check
          %p172 = pneg %p78
        $region30: #{tpu_custom_call.1} parent=23 // pred_check_branch
          %174 = sbr.rel (%p172) target = $region32
        $region31: #{tpu_custom_call.1} parent=23 // pred_region
          %s175 = smul.u32 2, %s23
          %177 = vsyncadd %s168, 0
          %s178 = smul.addr %s175, 2
          %s179 = smul.addr %s22, 16
          %s180 = sadd.s32 %s178, %s179
          %s181 = smul.addr %s180, 8
          %s182 = scalar_lea.hbm %s1, %s181
          %s183 = sshll.u32 %s171, 4
          %s184 = int_to_ptr.vmem [resolvable:$true] %s183
          %s185 = sshll.u32 %s182, 4
          %s186 = int_to_ptr.hbm [resolvable:$true] %s185
          %191 = dma.vmem_to_hbm [thread:$0]  %s184, 512, %s186, %s168, 256, 256, 16
        $region32: #{tpu_custom_call.1} parent=23 // pred_fallthru
          _
      $region24: #{tpu_custom_call.1} parent=5 // pred_fallthru
        _
      %p192 = scmp.le.s32.totalorder 2, %s13
      // Predicated region
      $region33: #{tpu_custom_call.1} parent=5 // pred_check
        %p193 = pneg %p192
      $region34: #{tpu_custom_call.1} parent=5 // pred_check_branch
        %195 = sbr.rel (%p193) target = $region36
      $region35: #{tpu_custom_call.1} parent=5 // pred_region
        %s196 = ssub.s32 %s13, 2
        // Predicated region
        $region37: #{tpu_custom_call.1} parent=35 // pred_check
          %p197 = pneg %p84
        $region38: #{tpu_custom_call.1} parent=35 // pred_check_branch
          %199 = sbr.rel (%p197) target = $region40
        $region39: #{tpu_custom_call.1} parent=35 // pred_region
          %s200 = sand.u32 %s69, 1
          %s201 = scalar_lea.sflag [#allocation4], %s200
          %s202 = sand.u32 %s69, 1
          %s203 = smul.addr %s202, 32
          %s204 = scalar_lea.vmem [#allocation5], %s203
          %206 = dma.done %s201, 512
        $region40: #{tpu_custom_call.1} parent=35 // pred_fallthru
          _
      $region36: #{tpu_custom_call.1} parent=5 // pred_fallthru
        _
    $region6: #{tpu_custom_call.1} parent=1 // loop_footer
      %s17 = sadd.s32 1, %s13
    $region7: #{tpu_custom_call.1} parent=1 // loop_footer_branch
      %12 = sbr.rel target = $region3
    $region8: #{tpu_custom_call.1} parent=1 // loop_exit
      _
    %207 = vsyncpa [#allocation3], 1
    %s208 = scalar_lea.sflag [#allocation3], 1
    %209 = vsyncpa %s208, 1
    %210 = vsyncpa [#allocation4], 1
    %s211 = scalar_lea.sflag [#allocation4], 1
    %212 = vsyncpa %s211, 1

</llo_original>
